<compile_context>
chip_gen: v7x
topology: tpu7x:2x2x1
jax: 0.10.0
libtpu: 0.0.40
codegen_flags: <defaults>
</compile_context>

<pallas_src>
import jax
import jax.numpy as jnp
from jax.experimental import pallas as pl
from jax.experimental.pallas import tpu as pltpu

NEG_SLOPE = 0.3
_VMEM_BUDGET = 40 * 1024 * 1024      # per-step working-set target (fits v7x 64 MiB/TC)
_VMEM_LIMIT_CAP = 48 * 1024 * 1024   # scoped-VMEM request cap, safe on v5e/v6e/v7x


def _round_up(n, m):
    return ((n + m - 1) // m) * m


def mlp_kernel(x_ref, w1_ref, b1_ref, w2_ref, b2_ref, o_ref):
    # Cast the streamed f32 x tile to bf16 on-chip (cheap VPU op, hidden under MXU).
    x = x_ref[...].astype(w1_ref.dtype)
    # h = x @ W1 + b1  (bf16 inputs, f32 accumulation on the MXU).
    h = jnp.dot(x, w1_ref[...], preferred_element_type=jnp.float32)
    h = h + b1_ref[...]                       # (1, Hp) bias broadcasts over batch tile
    # LeakyReLU(0.3) == max(x, 0.3*x) for slope < 1 (f32 elementwise: one vmul + one vmax).
    h = jnp.maximum(h, NEG_SLOPE * h)
    # out = h @ W2 + b2  (cast back to bf16 to feed the MXU).
    out = jnp.dot(h.astype(w2_ref.dtype), w2_ref[...],
                  preferred_element_type=jnp.float32)
    o_ref[...] = (out + b2_ref[...]).astype(o_ref.dtype)


def prepare_params(w1, b1, w2, b2):
    """One-time weight prep, hoisted out of the per-call forward path.

    w1: [inputDim, nNeurons] (pre-transposed vs. PyTorch's [out, in]), b1: [nNeurons]
    w2: [nNeurons, outputDim], b2: [outputDim]

    Pads the hidden dim to a multiple of 128 (lane-dense intermediate, full MXU
    tiles) and casts weights to bf16.  Zero padding keeps the math exact:
    padded hidden columns are 0, LeakyReLU(0)=0, and padded W2 rows are 0.
    The output dim is intentionally NOT padded (avoids output write amplification).
    """
    d_in, d_hidden = w1.shape
    d_out = w2.shape[1]
    d_hidden_p = _round_up(d_hidden, 128)

    w1_p = jnp.zeros((d_in, d_hidden_p), jnp.bfloat16).at[:, :d_hidden].set(
        w1.astype(jnp.bfloat16))
    b1_p = jnp.zeros((1, d_hidden_p), jnp.float32).at[0, :d_hidden].set(
        b1.astype(jnp.float32))
    w2_p = jnp.zeros((d_hidden_p, d_out), jnp.bfloat16).at[:d_hidden, :].set(
        w2.astype(jnp.bfloat16))
    b2_p = b2.astype(jnp.float32).reshape(1, d_out)
    return w1_p, b1_p, w2_p, b2_p


def _vmem_estimate(TB, d_in, d_hidden_p, d_out, weight_bytes):
    return (2 * TB * d_in * 4            # x tiles, double-buffered, f32
            + 2 * TB * d_out * 4         # out tiles, double-buffered, f32
            + TB * d_hidden_p * (4 + 2)  # f32 hidden + bf16 copy feeding 2nd matmul
            + weight_bytes)              # resident weights/biases


def _forward(x, params, TB, vmem_limit, single_buffer_weights):
    w1_p, b1_p, w2_p, b2_p = params
    B, d_in = x.shape
    d_hidden_p = w1_p.shape[1]
    d_out = w2_p.shape[1]
    n_tiles = pl.cdiv(B, TB)   # ragged last tile handled by Pallas (rows independent)

    # Resident operands have a constant index_map -> double-buffering them only
    # wastes VMEM; request single buffering when supported.
    wkw = {"pipeline_mode": pl.Buffered(1)} if single_buffer_weights else {}

    flops = 2 * B * (d_in * d_hidden_p + d_hidden_p * d_out)
    bytes_accessed = (x.size * 4 + w1_p.size * 2 + w2_p.size * 2
                      + b1_p.size * 4 + b2_p.size * 4 + B * d_out * 4)

    return pl.pallas_call(
        mlp_kernel,
        out_shape=jax.ShapeDtypeStruct((B, d_out), jnp.float32),
        grid_spec=pl.GridSpec(
            grid=(n_tiles,),
            in_specs=[
                pl.BlockSpec((TB, d_in), lambda i: (i, 0)),               # x streams over batch
                pl.BlockSpec((d_in, d_hidden_p), lambda i: (0, 0), **wkw),  # W1 resident
                pl.BlockSpec((1, d_hidden_p), lambda i: (0, 0), **wkw),     # b1 resident
                pl.BlockSpec((d_hidden_p, d_out), lambda i: (0, 0), **wkw),  # W2 resident
                pl.BlockSpec((1, d_out), lambda i: (0, 0), **wkw),           # b2 resident
            ],
            out_specs=pl.BlockSpec((TB, d_out), lambda i: (i, 0)),
        ),
        compiler_params=pltpu.CompilerParams(
            dimension_semantics=("parallel",),   # independent batch tiles (2 TCs on v7x)
            vmem_limit_bytes=vmem_limit,
        ),
        cost_estimate=pl.CostEstimate(
            flops=flops, transcendentals=0, bytes_accessed=bytes_accessed),
    )(x, w1_p, b1_p, w2_p, b2_p)


def neural_network_forward(x, params, *, block_batch=512):
    """Forward pass of Linear -> LeakyReLU(0.3) -> Linear.

    x: [B, inputDim] float32 ; params: output of prepare_params().
    Returns [B, outputDim] float32.
    """
    w1_p, b1_p, w2_p, b2_p = params
    B, d_in = x.shape
    d_hidden_p = w1_p.shape[1]
    d_out = w2_p.shape[1]
    weight_bytes = (w1_p.size + w2_p.size) * 2 + (b1_p.size + b2_p.size) * 4

    # Batch tile: multiple of 8 sublanes; large enough to amortize the ~0.35us
    # per-grid-step overhead, small enough to double-buffer inside the VMEM budget.
    TB = min(block_batch, _round_up(B, 8))
    # For large B keep >= 2 batch tiles so the "parallel" axis can shard across
    # v7x's 2 TensorCores (multiple of 256 keeps the MXU M dimension full).
    if B >= 512 and pl.cdiv(B, TB) < 2:
        TB = min(TB, _round_up(pl.cdiv(B, 2), 256))
    while TB > 8 and _vmem_estimate(TB, d_in, d_hidden_p, d_out, weight_bytes) > _VMEM_BUDGET:
        TB = max(8, _round_up(TB // 2, 8))

    est = _vmem_estimate(TB, d_in, d_hidden_p, d_out, weight_bytes)
    vmem_limit = int(min(_VMEM_LIMIT_CAP, max(32 * 1024 * 1024, 2 * est)))

    try:
        return _forward(x, params, TB, vmem_limit, single_buffer_weights=True)
    except Exception:
        # pl.Buffered(1) (single-buffered resident weights) not accepted by this
        # JAX version -> fall back to default double buffering (correctness identical).
        return _forward(x, params, TB, vmem_limit, single_buffer_weights=False)


if __name__ == "__main__":
    # Small shapes consistent with the module's forward.
    batch = 8
    input_dim = 32
    num_neurons = 64
    output_dim = 16

    key = jax.random.PRNGKey(0)
    kx, kw1, kb1, kw2, kb2 = jax.random.split(key, 5)

    x = jax.random.normal(kx, (batch, input_dim), dtype=jnp.float32)

    # PyTorch Linear stores W as [out, in]; we use the pre-transposed [in, out] layout.
    bound1 = 1.0 / (input_dim ** 0.5)
    w1_t = jax.random.uniform(kw1, (input_dim, num_neurons),
                              minval=-bound1, maxval=bound1, dtype=jnp.float32)
    b1 = jax.random.uniform(kb1, (num_neurons,),
                            minval=-bound1, maxval=bound1, dtype=jnp.float32)

    bound2 = 1.0 / (num_neurons ** 0.5)
    w2_t = jax.random.uniform(kw2, (num_neurons, output_dim),
                              minval=-bound2, maxval=bound2, dtype=jnp.float32)
    b2 = jax.random.uniform(kb2, (output_dim,),
                            minval=-bound2, maxval=bound2, dtype=jnp.float32)

    # One-time parameter prep (model init), then the cheap per-call forward.
    params = prepare_params(w1_t, b1, w2_t, b2)
    out = neural_network_forward(x, params)
    out = jax.block_until_ready(out)
    assert out.shape == (batch, output_dim)

    # Pure-JAX reference with the same bf16-in / f32-accumulate numerics.
    h_ref = jnp.dot(x.astype(jnp.bfloat16), w1_t.astype(jnp.bfloat16),
                    preferred_element_type=jnp.float32) + b1
    h_ref = jnp.maximum(h_ref, NEG_SLOPE * h_ref)
    ref = jnp.dot(h_ref.astype(jnp.bfloat16), w2_t.astype(jnp.bfloat16),
                  preferred_element_type=jnp.float32) + b2

    assert jnp.allclose(out, ref, atol=1e-2, rtol=1e-2), (
        f"max abs err = {jnp.max(jnp.abs(out - ref))}")

    print("KERNEL_OK")
</pallas_src>

<mosaic_0001>
module attributes {stable_mosaic.version = 11 : i64} {
  func.func @mlp_kernel(%arg0: i32, %arg1: memref<8x32xf32, #tpu.memory_space<vmem>>, %arg2: memref<32x128xbf16, #tpu.memory_space<vmem>>, %arg3: memref<1x128xf32, #tpu.memory_space<vmem>>, %arg4: memref<128x16xbf16, #tpu.memory_space<vmem>>, %arg5: memref<1x16xf32, #tpu.memory_space<vmem>>, %arg6: memref<8x16xf32, #tpu.memory_space<vmem>>) attributes {dimension_semantics = [#tpu.dimension_semantics<parallel>], iteration_bounds = array<i64: 1>, scalar_prefetch = 0 : i64, scratch_operands = 0 : i64, tpu.core_type = #tpu.core_type<tc>, window_params = [{transform_indices = @transform_0, window_bounds = array<i64: 8, 32>}, {pipeline_mode = #tpu.pipeline_mode<synchronous>, transform_indices = @transform_1, window_bounds = array<i64: 32, 128>}, {pipeline_mode = #tpu.pipeline_mode<synchronous>, transform_indices = @transform_2, window_bounds = array<i64: 1, 128>}, {pipeline_mode = #tpu.pipeline_mode<synchronous>, transform_indices = @transform_3, window_bounds = array<i64: 128, 16>}, {pipeline_mode = #tpu.pipeline_mode<synchronous>, transform_indices = @transform_4, window_bounds = array<i64: 1, 16>}, {transform_indices = @transform_5, window_bounds = array<i64: 8, 16>}]} {
    %c0 = arith.constant 0 : index
    %c0_0 = arith.constant 0 : index
    %0 = vector.load %arg1[%c0, %c0_0] : memref<8x32xf32, #tpu.memory_space<vmem>>, vector<8x32xf32>
    %1 = arith.truncf %0 : vector<8x32xf32> to vector<8x32xbf16>
    %c0_1 = arith.constant 0 : index
    %c0_2 = arith.constant 0 : index
    %2 = vector.load %arg2[%c0_1, %c0_2] : memref<32x128xbf16, #tpu.memory_space<vmem>>, vector<32x128xbf16>
    %cst = arith.constant dense<0.000000e+00> : vector<8x128xf32>
    %3 = tpu.matmul %1, %2, %cst {dimension_numbers = #tpu.dot_dimension_numbers<[1], [0], [0], [1], [0, 0, 1, 1], [], []>} : vector<8x32xbf16>, vector<32x128xbf16>, vector<8x128xf32> -> vector<8x128xf32>
    %c0_3 = arith.constant 0 : index
    %c0_4 = arith.constant 0 : index
    %4 = vector.load %arg3[%c0_3, %c0_4] : memref<1x128xf32, #tpu.memory_space<vmem>>, vector<1x128xf32>
    %5 = vector.broadcast %4 : vector<1x128xf32> to vector<8x128xf32>
    %6 = arith.addf %3, %5 : vector<8x128xf32>
    %cst_5 = arith.constant 3.000000e-01 : f32
    %7 = vector.broadcast %cst_5 : f32 to vector<8x128xf32>
    %8 = arith.mulf %7, %6 : vector<8x128xf32>
    %9 = arith.maximumf %6, %8 : vector<8x128xf32>
    %10 = arith.truncf %9 : vector<8x128xf32> to vector<8x128xbf16>
    %c0_6 = arith.constant 0 : index
    %c0_7 = arith.constant 0 : index
    %11 = vector.load %arg4[%c0_6, %c0_7] : memref<128x16xbf16, #tpu.memory_space<vmem>>, vector<128x16xbf16>
    %cst_8 = arith.constant dense<0.000000e+00> : vector<8x16xf32>
    %12 = tpu.matmul %10, %11, %cst_8 {dimension_numbers = #tpu.dot_dimension_numbers<[1], [0], [0], [1], [0, 0, 1, 1], [], []>} : vector<8x128xbf16>, vector<128x16xbf16>, vector<8x16xf32> -> vector<8x16xf32>
    %c0_9 = arith.constant 0 : index
    %c0_10 = arith.constant 0 : index
    %13 = vector.load %arg5[%c0_9, %c0_10] : memref<1x16xf32, #tpu.memory_space<vmem>>, vector<1x16xf32>
    %14 = vector.broadcast %13 : vector<1x16xf32> to vector<8x16xf32>
    %15 = arith.addf %12, %14 : vector<8x16xf32>
    %c0_11 = arith.constant 0 : index
    %c0_12 = arith.constant 0 : index
    %16 = vector.load %arg6[%c0_11, %c0_12] : memref<8x16xf32, #tpu.memory_space<vmem>>, vector<8x16xf32>
    tpu.vector_store %arg6[%c0_11, %c0_12], %15 {strides = array<i32>} : memref<8x16xf32, #tpu.memory_space<vmem>>, vector<8x16xf32>,
    return
  }
  func.func @transform_0(%arg0: i32) -> (i32, i32) {
    %c0_i32 = arith.constant 0 : i32
    %c0_i32_0 = arith.constant 0 : i32
    return %arg0, %c0_i32 : i32, i32
  }
  func.func @transform_1(%arg0: i32) -> (i32, i32) {
    %c0_i32 = arith.constant 0 : i32
    %c0_i32_0 = arith.constant 0 : i32
    %c0_i32_1 = arith.constant 0 : i32
    return %c0_i32, %c0_i32_0 : i32, i32
  }
  func.func @transform_2(%arg0: i32) -> (i32, i32) {
    %c0_i32 = arith.constant 0 : i32
    %c0_i32_0 = arith.constant 0 : i32
    %c0_i32_1 = arith.constant 0 : i32
    return %c0_i32, %c0_i32_0 : i32, i32
  }
  func.func @transform_3(%arg0: i32) -> (i32, i32) {
    %c0_i32 = arith.constant 0 : i32
    %c0_i32_0 = arith.constant 0 : i32
    %c0_i32_1 = arith.constant 0 : i32
    return %c0_i32, %c0_i32_0 : i32, i32
  }
  func.func @transform_4(%arg0: i32) -> (i32, i32) {
    %c0_i32 = arith.constant 0 : i32
    %c0_i32_0 = arith.constant 0 : i32
    %c0_i32_1 = arith.constant 0 : i32
    return %c0_i32, %c0_i32_0 : i32, i32
  }
  func.func @transform_5(%arg0: i32) -> (i32, i32) {
    %c0_i32 = arith.constant 0 : i32
    %c0_i32_0 = arith.constant 0 : i32
    return %arg0, %c0_i32 : i32, i32
  }
}

module attributes {stable_mosaic.version = 11 : i64} {
  func.func @mlp_kernel(%arg0: i32, %arg1: memref<8x32xf32, #tpu.memory_space<vmem>>, %arg2: memref<32x128xbf16, #tpu.memory_space<vmem>>, %arg3: memref<1x128xf32, #tpu.memory_space<vmem>>, %arg4: memref<128x16xbf16, #tpu.memory_space<vmem>>, %arg5: memref<1x16xf32, #tpu.memory_space<vmem>>, %arg6: memref<8x16xf32, #tpu.memory_space<vmem>>) attributes {dimension_semantics = [#tpu.dimension_semantics<parallel>], iteration_bounds = array<i64: 1>, scalar_prefetch = 0 : i64, scratch_operands = 0 : i64, tpu.core_type = #tpu.core_type<tc>, window_params = [{transform_indices = @transform_0, window_bounds = array<i64: 8, 32>}, {pipeline_mode = #tpu.pipeline_mode<synchronous>, transform_indices = @transform_1, window_bounds = array<i64: 32, 128>}, {pipeline_mode = #tpu.pipeline_mode<synchronous>, transform_indices = @transform_2, window_bounds = array<i64: 1, 128>}, {pipeline_mode = #tpu.pipeline_mode<synchronous>, transform_indices = @transform_3, window_bounds = array<i64: 128, 16>}, {pipeline_mode = #tpu.pipeline_mode<synchronous>, transform_indices = @transform_4, window_bounds = array<i64: 1, 16>}, {transform_indices = @transform_5, window_bounds = array<i64: 8, 16>}]} {
    %c0 = arith.constant 0 : index
    %c0_0 = arith.constant 0 : index
    %0 = vector.load %arg1[%c0, %c0_0] : memref<8x32xf32, #tpu.memory_space<vmem>>, vector<8x32xf32>
    %1 = arith.truncf %0 : vector<8x32xf32> to vector<8x32xbf16>
    %c0_1 = arith.constant 0 : index
    %c0_2 = arith.constant 0 : index
    %2 = vector.load %arg2[%c0_1, %c0_2] : memref<32x128xbf16, #tpu.memory_space<vmem>>, vector<32x128xbf16>
    %cst = arith.constant dense<0.000000e+00> : vector<8x128xf32>
    %3 = tpu.matmul %1, %2, %cst {dimension_numbers = #tpu.dot_dimension_numbers<[1], [0], [0], [1], [0, 0, 1, 1], [], []>} : vector<8x32xbf16>, vector<32x128xbf16>, vector<8x128xf32> -> vector<8x128xf32>
    %c0_3 = arith.constant 0 : index
    %c0_4 = arith.constant 0 : index
    %4 = vector.load %arg3[%c0_3, %c0_4] : memref<1x128xf32, #tpu.memory_space<vmem>>, vector<1x128xf32>
    %5 = vector.broadcast %4 : vector<1x128xf32> to vector<8x128xf32>
    %6 = arith.addf %3, %5 : vector<8x128xf32>
    %cst_5 = arith.constant 3.000000e-01 : f32
    %7 = vector.broadcast %cst_5 : f32 to vector<8x128xf32>
    %8 = arith.mulf %7, %6 : vector<8x128xf32>
    %9 = arith.maximumf %6, %8 : vector<8x128xf32>
    %10 = arith.truncf %9 : vector<8x128xf32> to vector<8x128xbf16>
    %c0_6 = arith.constant 0 : index
    %c0_7 = arith.constant 0 : index
    %11 = vector.load %arg4[%c0_6, %c0_7] : memref<128x16xbf16, #tpu.memory_space<vmem>>, vector<128x16xbf16>
    %cst_8 = arith.constant dense<0.000000e+00> : vector<8x16xf32>
    %12 = tpu.matmul %10, %11, %cst_8 {dimension_numbers = #tpu.dot_dimension_numbers<[1], [0], [0], [1], [0, 0, 1, 1], [], []>} : vector<8x128xbf16>, vector<128x16xbf16>, vector<8x16xf32> -> vector<8x16xf32>
    %c0_9 = arith.constant 0 : index
    %c0_10 = arith.constant 0 : index
    %13 = vector.load %arg5[%c0_9, %c0_10] : memref<1x16xf32, #tpu.memory_space<vmem>>, vector<1x16xf32>
    %14 = vector.broadcast %13 : vector<1x16xf32> to vector<8x16xf32>
    %15 = arith.addf %12, %14 : vector<8x16xf32>
    %c0_11 = arith.constant 0 : index
    %c0_12 = arith.constant 0 : index
    %16 = vector.load %arg6[%c0_11, %c0_12] : memref<8x16xf32, #tpu.memory_space<vmem>>, vector<8x16xf32>
    tpu.vector_store %arg6[%c0_11, %c0_12], %15 {strides = array<i32>} : memref<8x16xf32, #tpu.memory_space<vmem>>, vector<8x16xf32>,
    return
  }
  func.func @transform_0(%arg0: i32) -> (i32, i32) {
    %c0_i32 = arith.constant 0 : i32
    %c0_i32_0 = arith.constant 0 : i32
    return %arg0, %c0_i32 : i32, i32
  }
  func.func @transform_1(%arg0: i32) -> (i32, i32) {
    %c0_i32 = arith.constant 0 : i32
    %c0_i32_0 = arith.constant 0 : i32
    %c0_i32_1 = arith.constant 0 : i32
    return %c0_i32, %c0_i32_0 : i32, i32
  }
  func.func @transform_2(%arg0: i32) -> (i32, i32) {
    %c0_i32 = arith.constant 0 : i32
    %c0_i32_0 = arith.constant 0 : i32
    %c0_i32_1 = arith.constant 0 : i32
    return %c0_i32, %c0_i32_0 : i32, i32
  }
  func.func @transform_3(%arg0: i32) -> (i32, i32) {
    %c0_i32 = arith.constant 0 : i32
    %c0_i32_0 = arith.constant 0 : i32
    %c0_i32_1 = arith.constant 0 : i32
    return %c0_i32, %c0_i32_0 : i32, i32
  }
  func.func @transform_4(%arg0: i32) -> (i32, i32) {
    %c0_i32 = arith.constant 0 : i32
    %c0_i32_0 = arith.constant 0 : i32
    %c0_i32_1 = arith.constant 0 : i32
    return %c0_i32, %c0_i32_0 : i32, i32
  }
  func.func @transform_5(%arg0: i32) -> (i32, i32) {
    %c0_i32 = arith.constant 0 : i32
    %c0_i32_0 = arith.constant 0 : i32
    return %arg0, %c0_i32 : i32, i32
  }
}

</mosaic_0001>

<llo_original>
// kernel: tpu_custom_call.1
$region0: #{tpu_custom_call.1}
  #allocation0 [shape = 'u32[]', space=smem, size = 0x4, offset = 0x4, fixed_abs, tag = 'smem constant byte address 0x4 - core index']
  #allocation1 [shape = 'u32[144,128]{1,0:T(1,128)}', space=vmem, size = 0x12000, scoped, tag = 'internal scratch']
  %s0 = inlined_call_operand.vmem [shape: f32[8,32], index: 0, kind: input, shape index: {}]
  %s1 = inlined_call_operand.vmem [shape: bf16[32,128], index: 1, kind: input, shape index: {}]
  %s2 = inlined_call_operand.vmem [shape: f32[1,128], index: 2, kind: input, shape index: {}]
  %s3 = inlined_call_operand.vmem [shape: bf16[128,16], index: 3, kind: input, shape index: {}]
  %s4 = inlined_call_operand.vmem [shape: f32[1,16], index: 4, kind: input, shape index: {}]
  %s5 = inlined_call_operand.hbm [shape: f32[8,16], index: 5, kind: output, shape index: {}]
  %s6 = sld [smem:[#allocation0]]
  $region30: #{tpu_custom_call.1} parent=0
    _
  %s8 = ssub.s32 1, %s6
  %s9 = scalar_select 0, %s8, %s6
  $region1: #{tpu_custom_call.1} parent=0
    #allocation2 [shape = 'u8[4096]{0}', space=vmem, size = 0x1000, scoped, tag = 'output window, operand 0, single buffered']
    #allocation3 [shape = 's32[1]{0}', space=sflag, size = 0x4, scoped, tag = 'scoped memory for tpu_custom_call.1']
    %10 = vsyncpa [#allocation3], 0
    // Predicated region
    $region2: #{tpu_custom_call.1} parent=1 // pred_check
      _
    $region3: #{tpu_custom_call.1} parent=1 // pred_check_branch
      %12 = sbr.rel (0) target = $region5
    $region4: #{tpu_custom_call.1} parent=1 // pred_region
      _
    $region5: #{tpu_custom_call.1} parent=1 // pred_fallthru
      _
    // Predicated region
    $region6: #{tpu_custom_call.1} parent=1 // pred_check
      _
    $region7: #{tpu_custom_call.1} parent=1 // pred_check_branch
      %14 = sbr.rel (0) target = $region9
    $region8: #{tpu_custom_call.1} parent=1 // pred_region
      _
    $region9: #{tpu_custom_call.1} parent=1 // pred_fallthru
      _
    // Predicated region
    $region10: #{tpu_custom_call.1} parent=1 // pred_check
      _
    $region11: #{tpu_custom_call.1} parent=1 // pred_check_branch
      %16 = sbr.rel (0) target = $region13
    $region12: #{tpu_custom_call.1} parent=1 // pred_region
      _
    $region13: #{tpu_custom_call.1} parent=1 // pred_fallthru
      _
    // Predicated region
    $region14: #{tpu_custom_call.1} parent=1 // pred_check
      _
    $region15: #{tpu_custom_call.1} parent=1 // pred_check_branch
      %18 = sbr.rel (0) target = $region17
    $region16: #{tpu_custom_call.1} parent=1 // pred_region
      _
    $region17: #{tpu_custom_call.1} parent=1 // pred_fallthru
      _
    // Predicated region
    $region18: #{tpu_custom_call.1} parent=1 // pred_check
      _
    $region19: #{tpu_custom_call.1} parent=1 // pred_check_branch
      %20 = sbr.rel (0) target = $region21
    $region20: #{tpu_custom_call.1} parent=1 // pred_region
      _
    $region21: #{tpu_custom_call.1} parent=1 // pred_fallthru
      _
    %v22 = vld [vmem:[%s0] sm:$0xff]
    %v23 = vpack.c.bf16 %v22, %v22
    %v24 = vld [vmem:[%s1] sm:$0xf]
    %v25 = vld [vmem:[%s1 + $0x4] sm:$0xf]
    %v26 = vld [vmem:[%s1 + $0x8] sm:$0xf]
    %v27 = vld [vmem:[%s1 + $0xc] sm:$0xf]
    %v28 = vld [vmem:[%s2] sm:$0x1]
    %v30 = vlaneseq
    %v31 = vshrl.u32 %v30, 7
    %v32 = vsub.s32 0, %v31
    %v33 = vrot.slane %v28, %v32
    %v39 = vunpack.c.l.b16 %v24
    %v40 = vunpack.c.l.b16 %v25
    %v41 = vunpack.c.l.b16 %v26
    %v42 = vunpack.c.l.b16 %v27
    %v43 = vpack.c.b16 %v40, %v39
    %v44 = vpack.c.b16 %v42, %v41
    %vm47 = vcmask 261120
    %v49 = vsel %vm47, %v23, 0
    %51 = vmatprep.subr.bf16.mxu0 0
    %52 = vmatpush1.bf16.msra.mxu0 %v43
    %53 = vmatprep.subr.bf16.mxu0 0
    %54 = vmatpush1.bf16.msra.mxu0 %v44
    %55 = vmatprep.subr.bf16.mxu0 0
    %56 = vmatpush1.bf16.msra.mxu0 0
    %57 = vmatprep.subr.bf16.mxu0 0
    %58 = vmatpush1.bf16.msra.mxu0 0
    %59 = vmatprep.subr.bf16.mxu0 0
    %60 = vmatpush1.bf16.msra.mxu0 0
    %61 = vmatprep.subr.bf16.mxu0 0
    %62 = vmatpush1.bf16.msra.mxu0 0
    %63 = vmatprep.subr.bf16.mxu0 0
    %64 = vmatpush1.bf16.msra.mxu0 0
    %65 = vmatprep.subr.bf16.mxu0 0
    %66 = vmatpush1.bf16.msra.mxu0 0
    %67 = vmatprep.subr.bf16.mxu0 0
    %68 = vmatpush1.bf16.msra.mxu0 0
    %69 = vmatprep.subr.bf16.mxu0 0
    %70 = vmatpush1.bf16.msra.mxu0 0
    %71 = vmatprep.subr.bf16.mxu0 0
    %72 = vmatpush1.bf16.msra.mxu0 0
    %73 = vmatprep.subr.bf16.mxu0 0
    %74 = vmatpush1.bf16.msra.mxu0 0
    %75 = vmatprep.subr.bf16.mxu0 0
    %76 = vmatpush1.bf16.msra.mxu0 0
    %77 = vmatprep.subr.bf16.mxu0 0
    %78 = vmatpush1.bf16.msra.mxu0 0
    %79 = vmatprep.subr.bf16.mxu0 0
    %80 = vmatpush1.bf16.msra.mxu0 0
    %81 = vmatprep.subr.bf16.mxu0 0
    %82 = vmatpush1.bf16.msra.mxu0 0
    %83 = vmatprep.mubr.bf16.mxu0 0
    %84 = vmatmul.mubr.bf16.gmra.mrb[0].mxu0 %v49
    %v85 = vpop.f32.mrb[0].mxu0
    %v86 = vadd.f32 %v33, %v85
    %v87 = vpop.f32.mrb[0].mxu0
    %v88 = vpop.f32.mrb[0].mxu0
    %v89 = vpop.f32.mrb[0].mxu0
    %90 = vdwg.mxu0
    %v91 = vmul.f32 %v86, 0.3
    %v92 = vmax.f32 %v86, %v91
    %v93 = vpack.c.bf16 %v92, %v92
    %v94 = vld [vmem:[%s3] sm:$0xf]
    %v95 = vld [vmem:[%s3 + $0x4] sm:$0xf]
    %v96 = vld [vmem:[%s3 + $0x8] sm:$0xf]
    %v97 = vld [vmem:[%s3 + $0xc] sm:$0xf]
    %v98 = vld [vmem:[%s3 + $0x10] sm:$0xf]
    %v99 = vld [vmem:[%s3 + $0x14] sm:$0xf]
    %v100 = vld [vmem:[%s3 + $0x18] sm:$0xf]
    %v101 = vld [vmem:[%s3 + $0x1c] sm:$0xf]
    %v102 = vld [vmem:[%s3 + $0x20] sm:$0xf]
    %v103 = vld [vmem:[%s3 + $0x24] sm:$0xf]
    %v104 = vld [vmem:[%s3 + $0x28] sm:$0xf]
    %v105 = vld [vmem:[%s3 + $0x2c] sm:$0xf]
    %v106 = vld [vmem:[%s3 + $0x30] sm:$0xf]
    %v107 = vld [vmem:[%s3 + $0x34] sm:$0xf]
    %v108 = vld [vmem:[%s3 + $0x38] sm:$0xf]
    %v109 = vld [vmem:[%s3 + $0x3c] sm:$0xf]
    %v110 = vld [vmem:[%s4] sm:$0x1]
    %v112 = vlaneseq
    %v113 = vshrl.u32 %v112, 7
    %v114 = vsub.s32 0, %v113
    %v115 = vrot.slane %v110, %v114
    %v133 = vunpack.c.l.b16 %v94
    %v134 = vunpack.c.l.b16 %v95
    %v135 = vunpack.c.l.b16 %v96
    %v136 = vunpack.c.l.b16 %v97
    %v137 = vunpack.c.l.b16 %v98
    %v138 = vunpack.c.l.b16 %v99
    %v139 = vunpack.c.l.b16 %v100
    %v140 = vunpack.c.l.b16 %v101
    %v141 = vunpack.c.l.b16 %v102
    %v142 = vunpack.c.l.b16 %v103
    %v143 = vunpack.c.l.b16 %v104
    %v144 = vunpack.c.l.b16 %v105
    %v145 = vunpack.c.l.b16 %v106
    %v146 = vunpack.c.l.b16 %v107
    %v147 = vunpack.c.l.b16 %v108
    %v148 = vunpack.c.l.b16 %v109
    %v149 = vpack.c.b16 %v134, %v133
    %v150 = vpack.c.b16 %v136, %v135
    %v151 = vpack.c.b16 %v138, %v137
    %v152 = vpack.c.b16 %v140, %v139
    %v153 = vpack.c.b16 %v142, %v141
    %v154 = vpack.c.b16 %v144, %v143
    %v155 = vpack.c.b16 %v146, %v145
    %v156 = vpack.c.b16 %v148, %v147
    %165 = vmatprep.subr.bf16.mxu0 0
    %166 = vmatpush1.bf16.msra.mxu0 %v149
    %167 = vmatprep.subr.bf16.mxu0 0
    %168 = vmatpush1.bf16.msra.mxu0 %v150
    %169 = vmatprep.subr.bf16.mxu0 0
    %170 = vmatpush1.bf16.msra.mxu0 %v151
    %171 = vmatprep.subr.bf16.mxu0 0
    %172 = vmatpush1.bf16.msra.mxu0 %v152
    %173 = vmatprep.subr.bf16.mxu0 0
    %174 = vmatpush1.bf16.msra.mxu0 %v153
    %175 = vmatprep.subr.bf16.mxu0 0
    %176 = vmatpush1.bf16.msra.mxu0 %v154
    %177 = vmatprep.subr.bf16.mxu0 0
    %178 = vmatpush1.bf16.msra.mxu0 %v155
    %179 = vmatprep.subr.bf16.mxu0 0
    %180 = vmatpush1.bf16.msra.mxu0 %v156
    %181 = vmatprep.subr.bf16.mxu0 0
    %182 = vmatpush1.bf16.msra.mxu0 0
    %183 = vmatprep.subr.bf16.mxu0 0
    %184 = vmatpush1.bf16.msra.mxu0 0
    %185 = vmatprep.subr.bf16.mxu0 0
    %186 = vmatpush1.bf16.msra.mxu0 0
    %187 = vmatprep.subr.bf16.mxu0 0
    %188 = vmatpush1.bf16.msra.mxu0 0
    %189 = vmatprep.subr.bf16.mxu0 0
    %190 = vmatpush1.bf16.msra.mxu0 0
    %191 = vmatprep.subr.bf16.mxu0 0
    %192 = vmatpush1.bf16.msra.mxu0 0
    %193 = vmatprep.subr.bf16.mxu0 0
    %194 = vmatpush1.bf16.msra.mxu0 0
    %195 = vmatprep.subr.bf16.mxu0 0
    %196 = vmatpush1.bf16.msra.mxu0 0
    %197 = vmatprep.mubr.bf16.mxu0 0
    %198 = vmatmul.mubr.bf16.gmra.mrb[0].mxu0 %v93
    %v199 = vpop.f32.mrb[0].mxu0
    %v200 = vadd.f32 %v115, %v199
    %v201 = vpop.f32.mrb[0].mxu0
    %v202 = vpop.f32.mrb[0].mxu0
    %v203 = vpop.f32.mrb[0].mxu0
    %204 = vdwg.mxu0
    %vm205 = vcmask 130048
    %206 = vst.msk [vmem:[#allocation2] sm:$0xff] %vm205, %v200
    // Predicated region
    $region22: #{tpu_custom_call.1} parent=1 // pred_check
      _
    $region23: #{tpu_custom_call.1} parent=1 // pred_check_branch
      %208 = sbr.rel (0) target = $region25
    $region24: #{tpu_custom_call.1} parent=1 // pred_region
      %s210 = ssub.s32 128, 128
      %211 = vsyncadd [#allocation3], %s210
      %s213 = sshll.u32 [#allocation2], 4
      %s214 = int_to_ptr.vmem [resolvable:$true] %s213
      %216 = dma.vmem_to_hbm [thread:$0]  %s214, 128, %s5, [#allocation3]
    $region25: #{tpu_custom_call.1} parent=1 // pred_fallthru
      _
    // Predicated region
    $region26: #{tpu_custom_call.1} parent=1 // pred_check
      _
    $region27: #{tpu_custom_call.1} parent=1 // pred_check_branch
      %218 = sbr.rel (0) target = $region29
    $region28: #{tpu_custom_call.1} parent=1 // pred_region
      %219 = dma.done [#allocation3], 128
    $region29: #{tpu_custom_call.1} parent=1 // pred_fallthru
      _
    %220 = vsyncpa [#allocation3], 1

// kernel: tpu_custom_call.1
$region0: #{tpu_custom_call.1}
  #allocation0 [shape = 'u32[]', space=smem, size = 0x4, offset = 0x4, fixed_abs, tag = 'smem constant byte address 0x4 - core index']
  #allocation1 [shape = 'u32[144,128]{1,0:T(1,128)}', space=vmem, size = 0x12000, scoped, tag = 'internal scratch']
  %s0 = inlined_call_operand.vmem [shape: f32[8,32], index: 0, kind: input, shape index: {}]
  %s1 = inlined_call_operand.vmem [shape: bf16[32,128], index: 1, kind: input, shape index: {}]
  %s2 = inlined_call_operand.vmem [shape: f32[1,128], index: 2, kind: input, shape index: {}]
  %s3 = inlined_call_operand.vmem [shape: bf16[128,16], index: 3, kind: input, shape index: {}]
  %s4 = inlined_call_operand.vmem [shape: f32[1,16], index: 4, kind: input, shape index: {}]
  %s5 = inlined_call_operand.hbm [shape: f32[8,16], index: 5, kind: output, shape index: {}]
  %s6 = sld [smem:[#allocation0]]
  $region30: #{tpu_custom_call.1} parent=0
    _
  %s8 = ssub.s32 1, %s6
  %s9 = scalar_select 0, %s8, %s6
  $region1: #{tpu_custom_call.1} parent=0
    #allocation2 [shape = 'u8[4096]{0}', space=vmem, size = 0x1000, scoped, tag = 'output window, operand 0, single buffered']
    #allocation3 [shape = 's32[1]{0}', space=sflag, size = 0x4, scoped, tag = 'scoped memory for tpu_custom_call.1']
    %10 = vsyncpa [#allocation3], 0
    // Predicated region
    $region2: #{tpu_custom_call.1} parent=1 // pred_check
      _
    $region3: #{tpu_custom_call.1} parent=1 // pred_check_branch
      %12 = sbr.rel (0) target = $region5
    $region4: #{tpu_custom_call.1} parent=1 // pred_region
      _
    $region5: #{tpu_custom_call.1} parent=1 // pred_fallthru
      _
    // Predicated region
    $region6: #{tpu_custom_call.1} parent=1 // pred_check
      _
    $region7: #{tpu_custom_call.1} parent=1 // pred_check_branch
      %14 = sbr.rel (0) target = $region9
    $region8: #{tpu_custom_call.1} parent=1 // pred_region
      _
    $region9: #{tpu_custom_call.1} parent=1 // pred_fallthru
      _
    // Predicated region
    $region10: #{tpu_custom_call.1} parent=1 // pred_check
      _
    $region11: #{tpu_custom_call.1} parent=1 // pred_check_branch
      %16 = sbr.rel (0) target = $region13
    $region12: #{tpu_custom_call.1} parent=1 // pred_region
      _
    $region13: #{tpu_custom_call.1} parent=1 // pred_fallthru
      _
    // Predicated region
    $region14: #{tpu_custom_call.1} parent=1 // pred_check
      _
    $region15: #{tpu_custom_call.1} parent=1 // pred_check_branch
      %18 = sbr.rel (0) target = $region17
    $region16: #{tpu_custom_call.1} parent=1 // pred_region
      _
    $region17: #{tpu_custom_call.1} parent=1 // pred_fallthru
      _
    // Predicated region
    $region18: #{tpu_custom_call.1} parent=1 // pred_check
      _
    $region19: #{tpu_custom_call.1} parent=1 // pred_check_branch
      %20 = sbr.rel (0) target = $region21
    $region20: #{tpu_custom_call.1} parent=1 // pred_region
      _
    $region21: #{tpu_custom_call.1} parent=1 // pred_fallthru
      _
    %v22 = vld [vmem:[%s0] sm:$0xff]
    %v23 = vpack.c.bf16 %v22, %v22
    %v24 = vld [vmem:[%s1] sm:$0xf]
    %v25 = vld [vmem:[%s1 + $0x4] sm:$0xf]
    %v26 = vld [vmem:[%s1 + $0x8] sm:$0xf]
    %v27 = vld [vmem:[%s1 + $0xc] sm:$0xf]
    %v28 = vld [vmem:[%s2] sm:$0x1]
    %v30 = vlaneseq
    %v31 = vshrl.u32 %v30, 7
    %v32 = vsub.s32 0, %v31
    %v33 = vrot.slane %v28, %v32
    %v39 = vunpack.c.l.b16 %v24
    %v40 = vunpack.c.l.b16 %v25
    %v41 = vunpack.c.l.b16 %v26
    %v42 = vunpack.c.l.b16 %v27
    %v43 = vpack.c.b16 %v40, %v39
    %v44 = vpack.c.b16 %v42, %v41
    %vm47 = vcmask 261120
    %v49 = vsel %vm47, %v23, 0
    %51 = vmatprep.subr.bf16.mxu0 0
    %52 = vmatpush1.bf16.msra.mxu0 %v43
    %53 = vmatprep.subr.bf16.mxu0 0
    %54 = vmatpush1.bf16.msra.mxu0 %v44
    %55 = vmatprep.subr.bf16.mxu0 0
    %56 = vmatpush1.bf16.msra.mxu0 0
    %57 = vmatprep.subr.bf16.mxu0 0
    %58 = vmatpush1.bf16.msra.mxu0 0
    %59 = vmatprep.subr.bf16.mxu0 0
    %60 = vmatpush1.bf16.msra.mxu0 0
    %61 = vmatprep.subr.bf16.mxu0 0
    %62 = vmatpush1.bf16.msra.mxu0 0
    %63 = vmatprep.subr.bf16.mxu0 0
    %64 = vmatpush1.bf16.msra.mxu0 0
    %65 = vmatprep.subr.bf16.mxu0 0
    %66 = vmatpush1.bf16.msra.mxu0 0
    %67 = vmatprep.subr.bf16.mxu0 0
    %68 = vmatpush1.bf16.msra.mxu0 0
    %69 = vmatprep.subr.bf16.mxu0 0
    %70 = vmatpush1.bf16.msra.mxu0 0
    %71 = vmatprep.subr.bf16.mxu0 0
    %72 = vmatpush1.bf16.msra.mxu0 0
    %73 = vmatprep.subr.bf16.mxu0 0
    %74 = vmatpush1.bf16.msra.mxu0 0
    %75 = vmatprep.subr.bf16.mxu0 0
    %76 = vmatpush1.bf16.msra.mxu0 0
    %77 = vmatprep.subr.bf16.mxu0 0
    %78 = vmatpush1.bf16.msra.mxu0 0
    %79 = vmatprep.subr.bf16.mxu0 0
    %80 = vmatpush1.bf16.msra.mxu0 0
    %81 = vmatprep.subr.bf16.mxu0 0
    %82 = vmatpush1.bf16.msra.mxu0 0
    %83 = vmatprep.mubr.bf16.mxu0 0
    %84 = vmatmul.mubr.bf16.gmra.mrb[0].mxu0 %v49
    %v85 = vpop.f32.mrb[0].mxu0
    %v86 = vadd.f32 %v33, %v85
    %v87 = vpop.f32.mrb[0].mxu0
    %v88 = vpop.f32.mrb[0].mxu0
    %v89 = vpop.f32.mrb[0].mxu0
    %90 = vdwg.mxu0
    %v91 = vmul.f32 %v86, 0.3
    %v92 = vmax.f32 %v86, %v91
    %v93 = vpack.c.bf16 %v92, %v92
    %v94 = vld [vmem:[%s3] sm:$0xf]
    %v95 = vld [vmem:[%s3 + $0x4] sm:$0xf]
    %v96 = vld [vmem:[%s3 + $0x8] sm:$0xf]
    %v97 = vld [vmem:[%s3 + $0xc] sm:$0xf]
    %v98 = vld [vmem:[%s3 + $0x10] sm:$0xf]
    %v99 = vld [vmem:[%s3 + $0x14] sm:$0xf]
    %v100 = vld [vmem:[%s3 + $0x18] sm:$0xf]
    %v101 = vld [vmem:[%s3 + $0x1c] sm:$0xf]
    %v102 = vld [vmem:[%s3 + $0x20] sm:$0xf]
    %v103 = vld [vmem:[%s3 + $0x24] sm:$0xf]
    %v104 = vld [vmem:[%s3 + $0x28] sm:$0xf]
    %v105 = vld [vmem:[%s3 + $0x2c] sm:$0xf]
    %v106 = vld [vmem:[%s3 + $0x30] sm:$0xf]
    %v107 = vld [vmem:[%s3 + $0x34] sm:$0xf]
    %v108 = vld [vmem:[%s3 + $0x38] sm:$0xf]
    %v109 = vld [vmem:[%s3 + $0x3c] sm:$0xf]
    %v110 = vld [vmem:[%s4] sm:$0x1]
    %v112 = vlaneseq
    %v113 = vshrl.u32 %v112, 7
    %v114 = vsub.s32 0, %v113
    %v115 = vrot.slane %v110, %v114
    %v133 = vunpack.c.l.b16 %v94
    %v134 = vunpack.c.l.b16 %v95
    %v135 = vunpack.c.l.b16 %v96
    %v136 = vunpack.c.l.b16 %v97
    %v137 = vunpack.c.l.b16 %v98
    %v138 = vunpack.c.l.b16 %v99
    %v139 = vunpack.c.l.b16 %v100
    %v140 = vunpack.c.l.b16 %v101
    %v141 = vunpack.c.l.b16 %v102
    %v142 = vunpack.c.l.b16 %v103
    %v143 = vunpack.c.l.b16 %v104
    %v144 = vunpack.c.l.b16 %v105
    %v145 = vunpack.c.l.b16 %v106
    %v146 = vunpack.c.l.b16 %v107
    %v147 = vunpack.c.l.b16 %v108
    %v148 = vunpack.c.l.b16 %v109
    %v149 = vpack.c.b16 %v134, %v133
    %v150 = vpack.c.b16 %v136, %v135
    %v151 = vpack.c.b16 %v138, %v137
    %v152 = vpack.c.b16 %v140, %v139
    %v153 = vpack.c.b16 %v142, %v141
    %v154 = vpack.c.b16 %v144, %v143
    %v155 = vpack.c.b16 %v146, %v145
    %v156 = vpack.c.b16 %v148, %v147
    %165 = vmatprep.subr.bf16.mxu0 0
    %166 = vmatpush1.bf16.msra.mxu0 %v149
    %167 = vmatprep.subr.bf16.mxu0 0
    %168 = vmatpush1.bf16.msra.mxu0 %v150
    %169 = vmatprep.subr.bf16.mxu0 0
    %170 = vmatpush1.bf16.msra.mxu0 %v151
    %171 = vmatprep.subr.bf16.mxu0 0
    %172 = vmatpush1.bf16.msra.mxu0 %v152
    %173 = vmatprep.subr.bf16.mxu0 0
    %174 = vmatpush1.bf16.msra.mxu0 %v153
    %175 = vmatprep.subr.bf16.mxu0 0
    %176 = vmatpush1.bf16.msra.mxu0 %v154
    %177 = vmatprep.subr.bf16.mxu0 0
    %178 = vmatpush1.bf16.msra.mxu0 %v155
    %179 = vmatprep.subr.bf16.mxu0 0
    %180 = vmatpush1.bf16.msra.mxu0 %v156
    %181 = vmatprep.subr.bf16.mxu0 0
    %182 = vmatpush1.bf16.msra.mxu0 0
    %183 = vmatprep.subr.bf16.mxu0 0
    %184 = vmatpush1.bf16.msra.mxu0 0
    %185 = vmatprep.subr.bf16.mxu0 0
    %186 = vmatpush1.bf16.msra.mxu0 0
    %187 = vmatprep.subr.bf16.mxu0 0
    %188 = vmatpush1.bf16.msra.mxu0 0
    %189 = vmatprep.subr.bf16.mxu0 0
    %190 = vmatpush1.bf16.msra.mxu0 0
    %191 = vmatprep.subr.bf16.mxu0 0
    %192 = vmatpush1.bf16.msra.mxu0 0
    %193 = vmatprep.subr.bf16.mxu0 0
    %194 = vmatpush1.bf16.msra.mxu0 0
    %195 = vmatprep.subr.bf16.mxu0 0
    %196 = vmatpush1.bf16.msra.mxu0 0
    %197 = vmatprep.mubr.bf16.mxu0 0
    %198 = vmatmul.mubr.bf16.gmra.mrb[0].mxu0 %v93
    %v199 = vpop.f32.mrb[0].mxu0
    %v200 = vadd.f32 %v115, %v199
    %v201 = vpop.f32.mrb[0].mxu0
    %v202 = vpop.f32.mrb[0].mxu0
    %v203 = vpop.f32.mrb[0].mxu0
    %204 = vdwg.mxu0
    %vm205 = vcmask 130048
    %206 = vst.msk [vmem:[#allocation2] sm:$0xff] %vm205, %v200
    // Predicated region
    $region22: #{tpu_custom_call.1} parent=1 // pred_check
      _
    $region23: #{tpu_custom_call.1} parent=1 // pred_check_branch
      %208 = sbr.rel (0) target = $region25
    $region24: #{tpu_custom_call.1} parent=1 // pred_region
      %s210 = ssub.s32 128, 128
      %211 = vsyncadd [#allocation3], %s210
      %s213 = sshll.u32 [#allocation2], 4
      %s214 = int_to_ptr.vmem [resolvable:$true] %s213
      %216 = dma.vmem_to_hbm [thread:$0]  %s214, 128, %s5, [#allocation3]
    $region25: #{tpu_custom_call.1} parent=1 // pred_fallthru
      _
    // Predicated region
    $region26: #{tpu_custom_call.1} parent=1 // pred_check
      _
    $region27: #{tpu_custom_call.1} parent=1 // pred_check_branch
      %218 = sbr.rel (0) target = $region29
    $region28: #{tpu_custom_call.1} parent=1 // pred_region
      %219 = dma.done [#allocation3], 128
    $region29: #{tpu_custom_call.1} parent=1 // pred_fallthru
      _
    %220 = vsyncpa [#allocation3], 1

</llo_original>
